<compile_context>
chip_gen: v5e
topology: v5e:2x2
jax: 0.10.0
libtpu: 0.0.40
codegen_flags: <defaults>
</compile_context>

<pallas_src>
import functools

import jax
import jax.numpy as jnp
from jax.experimental import pallas as pl
from jax.experimental.pallas import tpu as pltpu


# ---------------------------------------------------------------------------
# Kernels
# ---------------------------------------------------------------------------

def _fused_kernel(x_ref, p_ref, o_ref, *, eps, inv_count):
    """Single-HBM-pass kernel: per-channel BN stats + folded affine.

    x_ref/o_ref: (N, C_TILE, HW) block in VMEM.
    p_ref:       (3, C_TILE, 1) packed per-channel params [w0, w1*gamma, w1*beta].
    """
    # Pass 1 (VMEM): per-channel mean over (N, HW).
    mean = jnp.sum(x_ref[...].astype(jnp.float32), axis=(0, 2), keepdims=True)
    mean = mean * inv_count                                        # (1, Ct, 1)

    # Pass 2 (VMEM): variance about the mean. Re-reads the VMEM tile so no
    # whole-block f32 temporary stays live across passes, and avoids
    # catastrophic cancellation of the one-pass E[x^2] - E[x]^2 form.
    d = x_ref[...].astype(jnp.float32) - mean
    var = jnp.sum(d * d, axis=(0, 2), keepdims=True) * inv_count   # (1, Ct, 1)
    inv_std = jax.lax.rsqrt(var + eps)

    w0 = p_ref[0].reshape(1, -1, 1)                                # (1, Ct, 1)
    w1g = p_ref[1].reshape(1, -1, 1)
    w1b = p_ref[2].reshape(1, -1, 1)
    # w0*x + w1*(gamma*(x-mean)*inv_std + beta)  ==  x*scale + shift
    scale = w0 + w1g * inv_std
    shift = w1b - w1g * mean * inv_std

    # Pass 3 (VMEM): fused multiply-add streamed straight to the output tile.
    o_ref[...] = (x_ref[...].astype(jnp.float32) * scale + shift).astype(o_ref.dtype)


def _stats_kernel(x_ref, sum_ref, sq_ref):
    """Accumulate per-channel sum / sum-of-squares over a (1, C2, HW_TILE) block."""
    @pl.when((pl.program_id(1) == 0) & (pl.program_id(2) == 0))
    def _():
        sum_ref[...] = jnp.zeros_like(sum_ref)
        sq_ref[...] = jnp.zeros_like(sq_ref)

    xf = x_ref[...].astype(jnp.float32)                            # (1, C2, HWt)
    sum_ref[...] += jnp.sum(xf, axis=(0, 2), keepdims=True).reshape(-1, 1)
    sq_ref[...] += jnp.sum(xf * xf, axis=(0, 2), keepdims=True).reshape(-1, 1)


def _apply_kernel(x_ref, p_ref, o_ref):
    """Elementwise y = x*scale[c] + shift[c] over a (1, C2, HW_TILE) block."""
    scale = p_ref[0].reshape(1, -1, 1)
    shift = p_ref[1].reshape(1, -1, 1)
    o_ref[...] = (x_ref[...].astype(jnp.float32) * scale + shift).astype(o_ref.dtype)


# ---------------------------------------------------------------------------
# Tiling / budgeting helpers
# ---------------------------------------------------------------------------

def _vmem_capacity_bytes():
    try:
        info = pltpu.get_tpu_info()
        cap = int(getattr(info, "vmem_capacity_bytes", 0) or 0)
        if cap > 0:
            return cap
    except Exception:
        pass
    return 64 << 20  # conservative (v7x-sized) fallback


def _sublane_multiple(dtype):
    # Native sublane packing: f32 -> 8, bf16 -> 16, int8/fp8 -> 32.
    return {4: 8, 2: 16, 1: 32}.get(jnp.dtype(dtype).itemsize, 8)


def _choose_c_tile(N, C, HW, itemsize, sublane, target_block_bytes):
    """Largest channel tile whose (N, c_tile, HW) block fits the byte budget,
    divides C, and is sublane-aligned for the input dtype. None -> use the
    two-pass (stats + apply) fallback path."""
    per_channel = max(1, N * HW * itemsize)
    if C * per_channel <= target_block_bytes:
        return C  # whole-C block (full-dim sublane exemption)
    max_c = target_block_bytes // per_channel
    t = (min(max_c, C) // sublane) * sublane
    while t >= sublane:
        if C % t == 0:
            return t
        t -= sublane
    return None


def _pick_hw_tile(HW, itemsize, sublane, target_block_bytes):
    if HW % 128 != 0:
        return HW  # full-dim exemption
    hw = HW
    while hw % 256 == 0 and sublane * hw * itemsize > target_block_bytes:
        hw //= 2
    return hw


def _pick_c2(C, sublane, hw_tile, itemsize, target_block_bytes):
    limit = max(sublane, target_block_bytes // max(1, hw_tile * itemsize))
    t = (min(C, limit) // sublane) * sublane
    while t >= sublane:
        if C % t == 0:
            return t
        t -= sublane
    return C  # full-dim exemption fallback


# ---------------------------------------------------------------------------
# Wrapper
# ---------------------------------------------------------------------------

def adaptive_norm(x_nchw, w0, w1, gamma, beta, *, eps=1e-3, force_two_pass=False):
    """x_nchw: (N, C, H, W). Returns same shape/dtype, matching PyTorch forward."""
    N, C, H, W = x_nchw.shape
    HW = H * W
    dtype = x_nchw.dtype
    itemsize = jnp.dtype(dtype).itemsize
    sub = _sublane_multiple(dtype)

    # Generation-aware block budget: ~1/16 of VMEM (v7x 64 MiB -> ~4 MiB blocks,
    # v5e/v6e 128 MiB -> ~8 MiB blocks), clamped to [2, 12] MiB.
    vmem_cap = _vmem_capacity_bytes()
    target_block_bytes = int(min(max(vmem_cap // 16, 2 << 20), 12 << 20))

    # Free, contiguous view (no transpose): channels on sublanes, H*W on lanes.
    # TODO(synk): lane-pad HW to a multiple of 128 (with count-corrected stats)
    # for small odd feature maps (7x7 / 14x14) to avoid masked vst.msk stores.
    x3 = x_nchw.reshape(N, C, HW)

    w0f = jnp.asarray(w0, jnp.float32).reshape(())
    w1f = jnp.asarray(w1, jnp.float32).reshape(())
    gammaf = jnp.asarray(gamma, jnp.float32).reshape(C)
    betaf = jnp.asarray(beta, jnp.float32).reshape(C)
    inv_count = 1.0 / float(N * HW)

    c_tile = None if force_two_pass else _choose_c_tile(
        N, C, HW, itemsize, sub, target_block_bytes)

    if c_tile is not None:
        # On the 2-TensorCore / 64 MiB-VMEM parts, avoid a length-1 grid so
        # both cores get work (only when an even, sublane-aligned split exists).
        if vmem_cap <= (64 << 20) and c_tile == C and C % (2 * sub) == 0:
            c_tile = C // 2

        # Pack the three per-channel params -> one small DMA per grid step.
        params = jnp.stack(
            [jnp.broadcast_to(w0f, (C,)), w1f * gammaf, w1f * betaf], axis=0
        ).reshape(3, C, 1)

        block_bytes = N * c_tile * HW * itemsize
        f32_bytes = N * c_tile * HW * 4
        vmem_limit = int(min(max(4 * block_bytes + f32_bytes + (4 << 20), 16 << 20),
                             max(vmem_cap // 2, 16 << 20)))

        out3 = pl.pallas_call(
            functools.partial(_fused_kernel, eps=float(eps), inv_count=inv_count),
            out_shape=jax.ShapeDtypeStruct((N, C, HW), dtype),
            grid=(C // c_tile,),
            in_specs=[
                pl.BlockSpec((N, c_tile, HW), lambda c: (0, c, 0)),   # x
                pl.BlockSpec((3, c_tile, 1), lambda c: (0, c, 0)),    # packed params
            ],
            out_specs=pl.BlockSpec((N, c_tile, HW), lambda c: (0, c, 0)),
            compiler_params=pltpu.CompilerParams(
                dimension_semantics=("parallel",),
                vmem_limit_bytes=vmem_limit,
            ),
        )(x3, params)
        return out3.reshape(N, C, H, W)

    # ---- Two-pass fallback: reduction grid for stats, then elementwise apply ----
    # (Used when even a minimum sublane-aligned channel block exceeds the VMEM
    #  block budget, e.g. very large N*H*W per channel on v7x.)
    hw_tile = _pick_hw_tile(HW, itemsize, sub, target_block_bytes)
    c2 = _pick_c2(C, sub, hw_tile, itemsize, target_block_bytes)
    grid = (C // c2, N, HW // hw_tile)

    block_bytes = c2 * hw_tile * itemsize
    vmem_limit = int(min(max(5 * block_bytes + (4 << 20), 16 << 20),
                         max(vmem_cap // 2, 16 << 20)))

    sums, sqs = pl.pallas_call(
        _stats_kernel,
        out_shape=(jax.ShapeDtypeStruct((C, 1), jnp.float32),
                   jax.ShapeDtypeStruct((C, 1), jnp.float32)),
        grid=grid,
        in_specs=[pl.BlockSpec((1, c2, hw_tile), lambda c, n, h: (n, c, h))],
        out_specs=(pl.BlockSpec((c2, 1), lambda c, n, h: (c, 0)),
                   pl.BlockSpec((c2, 1), lambda c, n, h: (c, 0))),
        compiler_params=pltpu.CompilerParams(
            dimension_semantics=("parallel", "arbitrary", "arbitrary"),
            vmem_limit_bytes=vmem_limit,
        ),
    )(x3)

    # Tiny per-channel math (C elements) in plain JAX; fold into scale/shift.
    mean = sums.reshape(C) * inv_count
    var = jnp.maximum(sqs.reshape(C) * inv_count - mean * mean, 0.0)
    inv_std = jax.lax.rsqrt(var + float(eps))
    scale = w0f + w1f * gammaf * inv_std
    shift = w1f * betaf - w1f * gammaf * mean * inv_std
    scale_shift = jnp.stack([scale, shift], axis=0).reshape(2, C, 1)

    out3 = pl.pallas_call(
        _apply_kernel,
        out_shape=jax.ShapeDtypeStruct((N, C, HW), dtype),
        grid=grid,
        in_specs=[pl.BlockSpec((1, c2, hw_tile), lambda c, n, h: (n, c, h)),
                  pl.BlockSpec((2, c2, 1), lambda c, n, h: (0, c, 0))],
        out_specs=pl.BlockSpec((1, c2, hw_tile), lambda c, n, h: (n, c, h)),
        compiler_params=pltpu.CompilerParams(
            dimension_semantics=("parallel", "parallel", "parallel"),
            vmem_limit_bytes=vmem_limit,
        ),
    )(x3, scale_shift)
    return out3.reshape(N, C, H, W)


# ---------------------------------------------------------------------------
# Reference + self-test
# ---------------------------------------------------------------------------

def adaptive_norm_ref(x, w0, w1, gamma, beta, eps=1e-3):
    xf = x.astype(jnp.float32)
    mean = jnp.mean(xf, axis=(0, 2, 3), keepdims=True)
    var = jnp.mean((xf - mean) ** 2, axis=(0, 2, 3), keepdims=True)
    bn = (xf - mean) * jax.lax.rsqrt(var + eps) * gamma.reshape(1, -1, 1, 1) \
        + beta.reshape(1, -1, 1, 1)
    out = w0.reshape(()) * xf + w1.reshape(()) * bn
    return out.astype(x.dtype)


if __name__ == "__main__":
    N, C, H, W = 2, 4, 16, 16
    key = jax.random.PRNGKey(0)
    kx, kg, kb, kx2 = jax.random.split(key, 4)
    x = jax.random.normal(kx, (N, C, H, W), dtype=jnp.float32)

    # 1) Parameters exactly as AdaptiveNorm.__init__ (w0=1, w1=0, gamma=1, beta=0).
    w0 = jnp.array([1.0], dtype=jnp.float32)
    w1 = jnp.array([0.0], dtype=jnp.float32)
    gamma = jnp.ones((C,), dtype=jnp.float32)
    beta = jnp.zeros((C,), dtype=jnp.float32)
    out = jax.block_until_ready(adaptive_norm(x, w0, w1, gamma, beta, eps=1e-3))
    ref = adaptive_norm_ref(x, w0, w1, gamma, beta, eps=1e-3)
    assert out.shape == x.shape and out.dtype == x.dtype
    assert jnp.allclose(out, ref, atol=1e-4, rtol=1e-4)

    # 2) Non-trivial (trained-like) parameters to exercise the BN branch.
    w0b = jnp.array([0.7], dtype=jnp.float32)
    w1b = jnp.array([0.3], dtype=jnp.float32)
    gamma_b = 1.0 + 0.1 * jax.random.normal(kg, (C,), dtype=jnp.float32)
    beta_b = 0.1 * jax.random.normal(kb, (C,), dtype=jnp.float32)
    out2 = jax.block_until_ready(adaptive_norm(x, w0b, w1b, gamma_b, beta_b, eps=1e-3))
    ref2 = adaptive_norm_ref(x, w0b, w1b, gamma_b, beta_b, eps=1e-3)
    assert jnp.allclose(out2, ref2, atol=1e-4, rtol=1e-4)

    # 3) bf16 input (exercises the re-read + f32-compute path, output cast back).
    xb = x.astype(jnp.bfloat16)
    out_b = jax.block_until_ready(adaptive_norm(xb, w0b, w1b, gamma_b, beta_b, eps=1e-3))
    ref_b = adaptive_norm_ref(xb, w0b, w1b, gamma_b, beta_b, eps=1e-3)
    assert out_b.dtype == jnp.bfloat16
    assert jnp.allclose(out_b.astype(jnp.float32), ref_b.astype(jnp.float32),
                        atol=3e-2, rtol=3e-2)

    # 4) Two-pass (stats + apply) fallback path used for large N*H*W shapes.
    N2, C2 = 2, 8
    x2 = jax.random.normal(kx2, (N2, C2, H, W), dtype=jnp.float32)
    gamma2 = 1.0 + 0.1 * jax.random.normal(kg, (C2,), dtype=jnp.float32)
    beta2 = 0.1 * jax.random.normal(kb, (C2,), dtype=jnp.float32)
    out3 = jax.block_until_ready(
        adaptive_norm(x2, w0b, w1b, gamma2, beta2, eps=1e-3, force_two_pass=True))
    ref3 = adaptive_norm_ref(x2, w0b, w1b, gamma2, beta2, eps=1e-3)
    assert jnp.allclose(out3, ref3, atol=1e-4, rtol=1e-4)

    print("KERNEL_OK")
</pallas_src>

<mosaic_0001>
module attributes {stable_mosaic.version = 11 : i64} {
  func.func @_fused_kernel(%arg0: i32, %arg1: memref<2x4x256xf32, #tpu.memory_space<vmem>>, %arg2: memref<3x4x1xf32, #tpu.memory_space<vmem>>, %arg3: memref<2x4x256xf32, #tpu.memory_space<vmem>>) attributes {dimension_semantics = [#tpu.dimension_semantics<parallel>], iteration_bounds = array<i64: 1>, scalar_prefetch = 0 : i64, scratch_operands = 0 : i64, tpu.core_type = #tpu.core_type<tc>, window_params = [{transform_indices = @transform_0, window_bounds = array<i64: 2, 4, 256>}, {transform_indices = @transform_1, window_bounds = array<i64: 3, 4, 1>}, {transform_indices = @transform_2, window_bounds = array<i64: 2, 4, 256>}]} {
    %c0 = arith.constant 0 : index
    %c0_0 = arith.constant 0 : index
    %c0_1 = arith.constant 0 : index
    %0 = vector.load %arg1[%c0, %c0_0, %c0_1] : memref<2x4x256xf32, #tpu.memory_space<vmem>>, vector<2x4x256xf32>
    %cst = arith.constant dense<0.000000e+00> : vector<4xf32>
    %1 = vector.multi_reduction <add>, %0, %cst [0, 2] : vector<2x4x256xf32> to vector<4xf32>
    %2 = vector.shape_cast %1 : vector<4xf32> to vector<1x4x1xf32>
    %cst_2 = arith.constant 0.001953125 : f32
    %3 = vector.broadcast %cst_2 : f32 to vector<1x4x1xf32>
    %4 = arith.mulf %2, %3 : vector<1x4x1xf32>
    %c0_3 = arith.constant 0 : index
    %c0_4 = arith.constant 0 : index
    %c0_5 = arith.constant 0 : index
    %5 = vector.load %arg1[%c0_3, %c0_4, %c0_5] : memref<2x4x256xf32, #tpu.memory_space<vmem>>, vector<2x4x256xf32>
    %6 = vector.broadcast %4 : vector<1x4x1xf32> to vector<2x4x256xf32>
    %7 = arith.subf %5, %6 : vector<2x4x256xf32>
    %8 = arith.mulf %7, %7 : vector<2x4x256xf32>
    %cst_6 = arith.constant dense<0.000000e+00> : vector<4xf32>
    %9 = vector.multi_reduction <add>, %8, %cst_6 [0, 2] : vector<2x4x256xf32> to vector<4xf32>
    %10 = vector.shape_cast %9 : vector<4xf32> to vector<1x4x1xf32>
    %cst_7 = arith.constant 0.001953125 : f32
    %11 = vector.broadcast %cst_7 : f32 to vector<1x4x1xf32>
    %12 = arith.mulf %10, %11 : vector<1x4x1xf32>
    %cst_8 = arith.constant 1.000000e-03 : f32
    %13 = vector.broadcast %cst_8 : f32 to vector<1x4x1xf32>
    %14 = arith.addf %12, %13 : vector<1x4x1xf32>
    %15 = math.rsqrt %14 : vector<1x4x1xf32>
    %c0_9 = arith.constant 0 : index
    %c0_10 = arith.constant 0 : index
    %c0_11 = arith.constant 0 : index
    %16 = vector.load %arg2[%c0_9, %c0_10, %c0_11] : memref<3x4x1xf32, #tpu.memory_space<vmem>>, vector<1x4x1xf32>
    %17 = vector.shape_cast %16 : vector<1x4x1xf32> to vector<4x1xf32>
    %18 = vector.shape_cast %17 : vector<4x1xf32> to vector<1x4x1xf32>
    %c1 = arith.constant 1 : index
    %c0_12 = arith.constant 0 : index
    %c0_13 = arith.constant 0 : index
    %19 = vector.load %arg2[%c1, %c0_12, %c0_13] : memref<3x4x1xf32, #tpu.memory_space<vmem>>, vector<1x4x1xf32>
    %20 = vector.shape_cast %19 : vector<1x4x1xf32> to vector<4x1xf32>
    %21 = vector.shape_cast %20 : vector<4x1xf32> to vector<1x4x1xf32>
    %c2 = arith.constant 2 : index
    %c0_14 = arith.constant 0 : index
    %c0_15 = arith.constant 0 : index
    %22 = vector.load %arg2[%c2, %c0_14, %c0_15] : memref<3x4x1xf32, #tpu.memory_space<vmem>>, vector<1x4x1xf32>
    %23 = vector.shape_cast %22 : vector<1x4x1xf32> to vector<4x1xf32>
    %24 = vector.shape_cast %23 : vector<4x1xf32> to vector<1x4x1xf32>
    %25 = arith.mulf %21, %15 : vector<1x4x1xf32>
    %26 = arith.addf %18, %25 : vector<1x4x1xf32>
    %27 = arith.mulf %21, %4 : vector<1x4x1xf32>
    %28 = arith.mulf %27, %15 : vector<1x4x1xf32>
    %29 = arith.subf %24, %28 : vector<1x4x1xf32>
    %c0_16 = arith.constant 0 : index
    %c0_17 = arith.constant 0 : index
    %c0_18 = arith.constant 0 : index
    %30 = vector.load %arg1[%c0_16, %c0_17, %c0_18] : memref<2x4x256xf32, #tpu.memory_space<vmem>>, vector<2x4x256xf32>
    %31 = vector.broadcast %26 : vector<1x4x1xf32> to vector<2x4x256xf32>
    %32 = arith.mulf %30, %31 : vector<2x4x256xf32>
    %33 = vector.broadcast %29 : vector<1x4x1xf32> to vector<2x4x256xf32>
    %34 = arith.addf %32, %33 : vector<2x4x256xf32>
    %c0_19 = arith.constant 0 : index
    %c0_20 = arith.constant 0 : index
    %c0_21 = arith.constant 0 : index
    %35 = vector.load %arg3[%c0_19, %c0_20, %c0_21] : memref<2x4x256xf32, #tpu.memory_space<vmem>>, vector<2x4x256xf32>
    tpu.vector_store %arg3[%c0_19, %c0_20, %c0_21], %34 {strides = array<i32>} : memref<2x4x256xf32, #tpu.memory_space<vmem>>, vector<2x4x256xf32>,
    return
  }
  func.func @transform_0(%arg0: i32) -> (i32, i32, i32) {
    %c0_i32 = arith.constant 0 : i32
    %c0_i32_0 = arith.constant 0 : i32
    %c0_i32_1 = arith.constant 0 : i32
    return %c0_i32, %arg0, %c0_i32_0 : i32, i32, i32
  }
  func.func @transform_1(%arg0: i32) -> (i32, i32, i32) {
    %c0_i32 = arith.constant 0 : i32
    %c0_i32_0 = arith.constant 0 : i32
    %c0_i32_1 = arith.constant 0 : i32
    return %c0_i32, %arg0, %c0_i32_0 : i32, i32, i32
  }
  func.func @transform_2(%arg0: i32) -> (i32, i32, i32) {
    %c0_i32 = arith.constant 0 : i32
    %c0_i32_0 = arith.constant 0 : i32
    %c0_i32_1 = arith.constant 0 : i32
    return %c0_i32, %arg0, %c0_i32_0 : i32, i32, i32
  }
}

</mosaic_0001>

<llo_original>
// kernel: tpu_custom_call.1
$region0: #{tpu_custom_call.1}
  #allocation0 [shape = 'u32[]', space=smem, size = 0x4, offset = 0x4, fixed_abs, tag = 'smem constant byte address 0x4 - core index']
  #allocation1 [shape = 'u32[72,128]{1,0:T(1,128)}', space=vmem, size = 0x9000, scoped, tag = 'internal scratch']
  %s0 = inlined_call_operand.hbm [shape: f32[2,4,256], index: 0, kind: input, shape index: {}]
  %s1 = inlined_call_operand.vmem [shape: f32[3,4,1], index: 1, kind: input, shape index: {}]
  %s2 = inlined_call_operand.hbm [shape: f32[2,4,256], index: 2, kind: output, shape index: {}]
  %s3 = sld [smem:[#allocation0]]
  $region22: #{tpu_custom_call.1} parent=0
    _
  %s5 = ssub.s32 1, %s3
  %s6 = scalar_select 0, %s5, %s3
  $region1: #{tpu_custom_call.1} parent=0
    #allocation2 [shape = 'u8[8192]{0}', space=vmem, size = 0x2000, scoped, tag = 'input window, operand 0, single buffered']
    #allocation3 [shape = 's32[1]{0}', space=sflag, size = 0x4, scoped, tag = 'scoped memory for tpu_custom_call.1']
    #allocation4 [shape = 's32[1]{0}', space=sflag, size = 0x4, scoped, tag = 'scoped memory for tpu_custom_call.1']
    #allocation5 [shape = 'u8[8192]{0}', space=vmem, size = 0x2000, scoped, tag = 'output window, operand 0, single buffered']
    %7 = vsyncpa [#allocation3], 0
    %8 = vsyncpa [#allocation4], 0
    // Predicated region
    $region2: #{tpu_custom_call.1} parent=1 // pred_check
      _
    $region3: #{tpu_custom_call.1} parent=1 // pred_check_branch
      %10 = sbr.rel (0) target = $region5
    $region4: #{tpu_custom_call.1} parent=1 // pred_region
      %12 = vsyncadd [#allocation3], 0
      %s13 = sshll.u32 %s0, 4
      %s14 = int_to_ptr.hbm [resolvable:$true] %s13
      %s15 = sshll.u32 [#allocation2], 4
      %s16 = int_to_ptr.vmem [resolvable:$true] %s15
      %21 = dma.hbm_to_vmem [thread:$0]  %s14, 256, %s16, [#allocation3], 128, 128, 8
    $region5: #{tpu_custom_call.1} parent=1 // pred_fallthru
      _
    // Predicated region
    $region6: #{tpu_custom_call.1} parent=1 // pred_check
      _
    $region7: #{tpu_custom_call.1} parent=1 // pred_check_branch
      %23 = sbr.rel (0) target = $region9
    $region8: #{tpu_custom_call.1} parent=1 // pred_region
      _
    $region9: #{tpu_custom_call.1} parent=1 // pred_fallthru
      _
    // Predicated region
    $region10: #{tpu_custom_call.1} parent=1 // pred_check
      _
    $region11: #{tpu_custom_call.1} parent=1 // pred_check_branch
      %25 = sbr.rel (0) target = $region13
    $region12: #{tpu_custom_call.1} parent=1 // pred_region
      %27 = dma.done [#allocation3], 256
    $region13: #{tpu_custom_call.1} parent=1 // pred_fallthru
      _
    %v28 = vld [vmem:[#allocation2] sm:$0xff]
    %v29 = vld [vmem:[#allocation2 + $0x8] sm:$0xff]
    %32 = vst [vmem:[#allocation1] ss:$2 sm:$0xff] %v28
    %v33 = vld.sshfl [vmem:[#allocation1] sm:$0xff pattern:$0x75316420]
    %v34 = vld.sshfl [vmem:[#allocation1 + $0x8] sm:$0xff pattern:$0x75316420]
    %s35 = scalar_lea.vmem [#allocation1], 16
    %36 = vst [vmem:[%s35] ss:$2 sm:$0xff] %v29
    %v37 = vld.sshfl [vmem:[#allocation1 + $0x10] sm:$0xff pattern:$0x75316420]
    %v38 = vld.sshfl [vmem:[#allocation1 + $0x18] sm:$0xff pattern:$0x75316420]
    %vm43 = vcmask 1043456
    %v44 = vsel %vm43, %v33, 0.0
    %v45 = vsel %vm43, %v34, 0.0
    %v46 = vadd.f32 %v44, %v45
    %v47 = vsel %vm43, %v37, 0.0
    %v48 = vadd.f32 %v46, %v47
    %v49 = vsel %vm43, %v38, 0.0
    %v50 = vadd.f32 %v48, %v49
    %51 = vadd.xlane.f32.xlu0 %v50
    %v52 = vpop.xlane.xlu0 %51
    %v53 = vmul.f32 %v52, 0.001953125
    %v56 = vunpack.c.l.s4 839922192
    %v57 = vunpack.c.0.s8 %v56
    %v58 = vperm.slane %v53, %v57
    %v60 = vsub.f32 %v28, %v58
    %v61 = vsub.f32 %v29, %v58
    %v62 = vmul.f32 %v60, %v60
    %v63 = vmul.f32 %v61, %v61
    %66 = vst [vmem:[#allocation1] ss:$2 sm:$0xff] %v62
    %v67 = vld.sshfl [vmem:[#allocation1] sm:$0xff pattern:$0x75316420]
    %v68 = vld.sshfl [vmem:[#allocation1 + $0x8] sm:$0xff pattern:$0x75316420]
    %s69 = scalar_lea.vmem [#allocation1], 16
    %70 = vst [vmem:[%s69] ss:$2 sm:$0xff] %v63
    %v71 = vld.sshfl [vmem:[#allocation1 + $0x10] sm:$0xff pattern:$0x75316420]
    %v72 = vld.sshfl [vmem:[#allocation1 + $0x18] sm:$0xff pattern:$0x75316420]
    %v77 = vsel %vm43, %v67, 0.0
    %v78 = vsel %vm43, %v68, 0.0
    %v79 = vadd.f32 %v77, %v78
    %v80 = vsel %vm43, %v71, 0.0
    %v81 = vadd.f32 %v79, %v80
    %v82 = vsel %vm43, %v72, 0.0
    %v83 = vadd.f32 %v81, %v82
    %84 = vadd.xlane.f32.xlu0 %v83
    %v85 = vpop.xlane.xlu0 %84
    %v86 = vmul.f32 %v85, 0.001953125
    %v87 = vadd.f32 %v86, 0.001
    %v88 = vrsqrt.pop %v87
    %v89 = vmul.f32 %v88, %v87
    %v90 = vmul.f32 %v89, %v88
    %v91 = vmul.f32 0.5, %v90
    %v92 = vsub.f32 1.5, %v91
    %v93 = vmul.f32 %v88, %v92
    %vm94 = vweird.f32 %v87
    %vm95 = vweird.f32 %v88
    %vm96 = vmor %vm94, %vm95
    %v97 = vsel %vm96, %v88, %v93
    %v98 = vld [vmem:[%s1] sm:$0xf]
    %s99 = scalar_lea.vmem %s1, 4
    %v100 = vld [vmem:[%s99] sm:$0xf]
    %s101 = scalar_lea.vmem %s1, 8
    %v102 = vld [vmem:[%s101] sm:$0xf]
    %v103 = vmul.f32 %v100, %v97
    %v104 = vadd.f32 %v98, %v103
    %v105 = vmul.f32 %v100, %v53
    %v106 = vmul.f32 %v105, %v97
    %v107 = vsub.f32 %v102, %v106
    %109 = vset.pattern.permute.xlu0 0
    %110 = vperm.xlu0 %109, %v104
    %v111 = vpop.permute.xlu0 %110
    %v113 = vunpack.c.l.s4 839922192
    %v114 = vunpack.c.0.s8 %v113
    %v115 = vperm.slane %v111, %v114
    %v117 = vmul.f32 %v28, %v115
    %v118 = vmul.f32 %v29, %v115
    %120 = vset.pattern.permute.xlu0 0
    %121 = vperm.xlu0 %120, %v107
    %v122 = vpop.permute.xlu0 %121
    %v124 = vunpack.c.l.s4 839922192
    %v125 = vunpack.c.0.s8 %v124
    %v126 = vperm.slane %v122, %v125
    %v128 = vadd.f32 %v117, %v126
    %v129 = vadd.f32 %v118, %v126
    %130 = vst [vmem:[#allocation5] sm:$0xff] %v128
    %131 = vst [vmem:[#allocation5 + $0x8] sm:$0xff] %v129
    // Predicated region
    $region14: #{tpu_custom_call.1} parent=1 // pred_check
      _
    $region15: #{tpu_custom_call.1} parent=1 // pred_check_branch
      %133 = sbr.rel (0) target = $region17
    $region16: #{tpu_custom_call.1} parent=1 // pred_region
      %135 = vsyncadd [#allocation4], 0
      %s136 = sshll.u32 [#allocation5], 4
      %s137 = int_to_ptr.vmem [resolvable:$true] %s136
      %s138 = sshll.u32 %s2, 4
      %s139 = int_to_ptr.hbm [resolvable:$true] %s138
      %144 = dma.vmem_to_hbm [thread:$0]  %s137, 256, %s139, [#allocation4], 128, 128, 8
    $region17: #{tpu_custom_call.1} parent=1 // pred_fallthru
      _
    // Predicated region
    $region18: #{tpu_custom_call.1} parent=1 // pred_check
      _
    $region19: #{tpu_custom_call.1} parent=1 // pred_check_branch
      %146 = sbr.rel (0) target = $region21
    $region20: #{tpu_custom_call.1} parent=1 // pred_region
      %148 = dma.done [#allocation4], 256
    $region21: #{tpu_custom_call.1} parent=1 // pred_fallthru
      _
    %149 = vsyncpa [#allocation3], 1
    %150 = vsyncpa [#allocation4], 1

</llo_original>
